<compile_context>
chip_gen: v7x
topology: tpu7x:2x2x1
jax: 0.10.0
libtpu: 0.0.40
codegen_flags: <defaults>
</compile_context>

<pallas_src>
import functools

import jax
import jax.numpy as jnp
from jax import lax
from jax.experimental import pallas as pl
from jax.experimental.pallas import tpu as pltpu


def _ceil_to(v, m):
    return ((v + m - 1) // m) * m


def _pick_tile(total, cap):
    """Largest multiple of 128 that divides `total` and is <= cap (>= 128)."""
    best = 128
    t = 128
    while t <= min(total, cap):
        if total % t == 0:
            best = t
        t += 128
    return best


def linear_scale_kernel(x_ref, wt_ref, b_ref, r_ref, rh_ref):
    # rh = r * (x @ W^T + b)   (rows pre-scaled by r = D^{-1/2})
    h = jnp.dot(x_ref[...], wt_ref[...], preferred_element_type=jnp.float32)
    rh_ref[...] = r_ref[...] * (h + b_ref[...])


def aggregate_kernel(adj_ref, rh_ref, r_ref, out_ref, *, t_k, rh_resident):
    # out_i = r_i * sum_k adj_hat[i, k] @ rh[k]
    # out_ref (f32, block index constant over k) is the accumulator.
    k = pl.program_id(1)

    @pl.when(k == 0)
    def _():
        out_ref[...] = jnp.zeros_like(out_ref)

    if rh_resident:
        start = pl.multiple_of(k * t_k, t_k)
        rh_k = rh_ref[pl.ds(start, t_k), :]
    else:
        rh_k = rh_ref[...]

    # adj tile arrives as bf16 (exact {0,1,2}); upcast in-register, f32 acc.
    out_ref[...] += jnp.dot(adj_ref[...].astype(jnp.float32), rh_k,
                            preferred_element_type=jnp.float32)

    @pl.when(k == pl.num_programs(1) - 1)
    def _():
        out_ref[...] = r_ref[...] * out_ref[...]


def gcn_forward(x, w, b, adj):
    """x: [N, F_in], w: [F_out, F_in] (PyTorch Linear layout), b: [F_out], adj: [N, N]."""
    n, f_in = x.shape
    f_out = w.shape[0]
    f32 = jnp.float32

    # 128-granular padding only (pad waste < 128 rows/cols).
    n_p = _ceil_to(n, 128)
    f_in_p = _ceil_to(f_in, 128)
    f_out_p = _ceil_to(f_out, 128)   # do NOT widen to 256: kernel 2 is HBM-bound

    # --- One fused wrapper pass over adj: +I fold, pad, bf16 cast -----------
    # deg is reduced from the (exact) bf16 result, so no extra f32 adj pass.
    adj_hat = adj.astype(f32) + jnp.eye(n, dtype=f32)
    adj_bf = jnp.pad(adj_hat, ((0, n_p - n), (0, n_p - n))).astype(jnp.bfloat16)
    deg = jnp.sum(adj_bf.astype(f32), axis=1)               # padded rows -> 0
    r = lax.rsqrt(deg)
    r_p = jnp.where(jnp.isinf(r), 0.0, r).reshape(n_p, 1)   # deg==0 -> 0

    x_p = jnp.zeros((n_p, f_in_p), f32).at[:n, :f_in].set(x.astype(f32))
    wt_p = jnp.zeros((f_in_p, f_out_p), f32).at[:f_in, :f_out].set(
        jnp.transpose(w).astype(f32))
    b_p = jnp.zeros((1, f_out_p), f32).at[0, :f_out].set(b.astype(f32))

    # ---- Kernel 1: rh = r * (x @ W^T + b), tiled over rows ------------------
    t_lin = _pick_tile(n_p, 512)
    vmem_k1 = (2 * t_lin * f_in_p * 4 + 2 * f_in_p * f_out_p * 4
               + 2 * f_out_p * 4 + 2 * t_lin * 4 + 2 * t_lin * f_out_p * 4)
    rh = pl.pallas_call(
        linear_scale_kernel,
        out_shape=jax.ShapeDtypeStruct((n_p, f_out_p), f32),
        grid_spec=pltpu.PrefetchScalarGridSpec(
            num_scalar_prefetch=0,
            grid=(n_p // t_lin,),
            in_specs=[
                pl.BlockSpec((t_lin, f_in_p), lambda i: (i, 0)),
                pl.BlockSpec((f_in_p, f_out_p), lambda i: (0, 0)),
                pl.BlockSpec((1, f_out_p), lambda i: (0, 0)),
                pl.BlockSpec((t_lin, 1), lambda i: (i, 0)),
            ],
            out_specs=pl.BlockSpec((t_lin, f_out_p), lambda i: (i, 0)),
        ),
        compiler_params=pltpu.CompilerParams(
            dimension_semantics=("parallel",),
            vmem_limit_bytes=int(min(max(2 * vmem_k1, 16 << 20), 48 << 20))),
    )(x_p, wt_p, b_p, r_p)

    # ---- Kernel 2: out = r * (adj_hat @ rh), tiled (rows x K) ---------------
    # Row tile up to 1024 (fewer rh re-reads when streaming), capped at n_p/2
    # for n_p >= 256 so the "parallel" row axis feeds both v7x TensorCores.
    t_m_cap = 1024 if n_p < 256 else min(1024, n_p // 2)
    t_m = _pick_tile(n_p, t_m_cap)
    t_k = _pick_tile(n_p, 512)

    # rh VMEM-resident (loaded once) when 2 buffers of the full array fit a
    # conservative 16 MiB budget; otherwise streamed per-K.
    rh_resident = 2 * n_p * f_out_p * 4 <= (16 << 20)

    vmem_k2 = (2 * t_m * t_k * 2                               # adj (bf16)
               + (2 * n_p * f_out_p * 4 if rh_resident
                  else 2 * t_k * f_out_p * 4)                  # rh
               + 2 * t_m * f_out_p * 4                         # out accumulator
               + 2 * t_m * 4)                                  # r
    vmem_limit = int(min(max(2 * vmem_k2, 16 << 20), 48 << 20))

    if rh_resident:
        rh_spec = pl.BlockSpec((n_p, f_out_p), lambda i, k: (0, 0))
    else:
        rh_spec = pl.BlockSpec((t_k, f_out_p), lambda i, k: (k, 0))

    cost = pl.CostEstimate(
        flops=2 * n_p * n_p * f_out_p,
        transcendentals=0,
        bytes_accessed=(2 * n_p * n_p                          # bf16 adj
                        + 4 * n_p * f_out_p * (1 if rh_resident
                                               else n_p // t_m)
                        + 4 * n_p * f_out_p + 4 * n_p),
    )

    out_p = pl.pallas_call(
        functools.partial(aggregate_kernel, t_k=t_k, rh_resident=rh_resident),
        out_shape=jax.ShapeDtypeStruct((n_p, f_out_p), f32),
        grid_spec=pltpu.PrefetchScalarGridSpec(
            num_scalar_prefetch=0,
            grid=(n_p // t_m, n_p // t_k),
            in_specs=[
                pl.BlockSpec((t_m, t_k), lambda i, k: (i, k)),   # adj tile bf16
                rh_spec,                                         # rh (resident/streamed)
                pl.BlockSpec((t_m, 1), lambda i, k: (i, 0)),     # r[i]
            ],
            out_specs=pl.BlockSpec((t_m, f_out_p), lambda i, k: (i, 0)),
        ),
        compiler_params=pltpu.CompilerParams(
            dimension_semantics=("parallel", "arbitrary"),
            vmem_limit_bytes=vmem_limit),
        cost_estimate=cost,
    )(adj_bf, rh, r_p)

    return out_p[:n, :f_out]


if __name__ == "__main__":
    # Small, deterministic example consistent with GCN.forward (only layer4
    # is used): in_features -> out_features over an N-node graph.
    N = 16           # number of graph nodes
    F_IN = 8         # in_features
    F_OUT = 32       # out_features

    key = jax.random.PRNGKey(0)
    kx, kadj, kw, kb = jax.random.split(key, 4)

    x = jax.random.normal(kx, (N, F_IN), dtype=jnp.float32)
    # Symmetric non-negative binary adjacency (typical graph adjacency).
    a = jax.random.uniform(kadj, (N, N), dtype=jnp.float32)
    adj = ((a + a.T) * 0.5 > 0.7).astype(jnp.float32)

    # nn.Linear(F_IN, F_OUT)-style deterministic init (uniform +-1/sqrt(F_IN)).
    bound = 1.0 / (F_IN ** 0.5)
    w = jax.random.uniform(kw, (F_OUT, F_IN), minval=-bound, maxval=bound,
                           dtype=jnp.float32)
    b = jax.random.uniform(kb, (F_OUT,), minval=-bound, maxval=bound,
                           dtype=jnp.float32)

    out = gcn_forward(x, w, b, adj)
    jax.block_until_ready(out)

    # Pure-JAX reference check of the original (unfolded) math.
    h_ref = x @ w.T + b
    adj_hat = adj + jnp.eye(N, dtype=jnp.float32)
    r_ref = jnp.power(adj_hat.sum(1), -0.5)
    r_ref = jnp.where(jnp.isinf(r_ref), 0.0, r_ref)
    adj_norm = jnp.diag(r_ref) @ adj_hat @ jnp.diag(r_ref)
    ref = adj_norm @ h_ref
    assert out.shape == ref.shape
    assert jnp.allclose(out, ref, atol=1e-4, rtol=1e-4)

    print("KERNEL_OK")
</pallas_src>

<mosaic_0001>
module attributes {stable_mosaic.version = 11 : i64} {
  func.func @linear_scale_kernel(%arg0: i32, %arg1: memref<128x128xf32, #tpu.memory_space<vmem>>, %arg2: memref<128x128xf32, #tpu.memory_space<vmem>>, %arg3: memref<1x128xf32, #tpu.memory_space<vmem>>, %arg4: memref<128x1xf32, #tpu.memory_space<vmem>>, %arg5: memref<128x128xf32, #tpu.memory_space<vmem>>) attributes {dimension_semantics = [#tpu.dimension_semantics<parallel>], iteration_bounds = array<i64: 1>, scalar_prefetch = 0 : i64, scratch_operands = 0 : i64, tpu.core_type = #tpu.core_type<tc>, window_params = [{transform_indices = @transform_0, window_bounds = array<i64: 128, 128>}, {pipeline_mode = #tpu.pipeline_mode<synchronous>, transform_indices = @transform_1, window_bounds = array<i64: 128, 128>}, {pipeline_mode = #tpu.pipeline_mode<synchronous>, transform_indices = @transform_2, window_bounds = array<i64: 1, 128>}, {transform_indices = @transform_3, window_bounds = array<i64: 128, 1>}, {transform_indices = @transform_4, window_bounds = array<i64: 128, 128>}]} {
    %c0 = arith.constant 0 : index
    %c0_0 = arith.constant 0 : index
    %0 = vector.load %arg1[%c0, %c0_0] : memref<128x128xf32, #tpu.memory_space<vmem>>, vector<128x128xf32>
    %c0_1 = arith.constant 0 : index
    %c0_2 = arith.constant 0 : index
    %1 = vector.load %arg2[%c0_1, %c0_2] : memref<128x128xf32, #tpu.memory_space<vmem>>, vector<128x128xf32>
    %cst = arith.constant dense<0.000000e+00> : vector<128x128xf32>
    %2 = tpu.matmul %0, %1, %cst {dimension_numbers = #tpu.dot_dimension_numbers<[1], [0], [0], [1], [0, 0, 1, 1], [], []>} : vector<128x128xf32>, vector<128x128xf32>, vector<128x128xf32> -> vector<128x128xf32>
    %c0_3 = arith.constant 0 : index
    %c0_4 = arith.constant 0 : index
    %3 = vector.load %arg4[%c0_3, %c0_4] : memref<128x1xf32, #tpu.memory_space<vmem>>, vector<128x1xf32>
    %c0_5 = arith.constant 0 : index
    %c0_6 = arith.constant 0 : index
    %4 = vector.load %arg3[%c0_5, %c0_6] : memref<1x128xf32, #tpu.memory_space<vmem>>, vector<1x128xf32>
    %5 = vector.broadcast %4 : vector<1x128xf32> to vector<128x128xf32>
    %6 = arith.addf %2, %5 : vector<128x128xf32>
    %7 = vector.broadcast %3 : vector<128x1xf32> to vector<128x128xf32>
    %8 = arith.mulf %7, %6 : vector<128x128xf32>
    %c0_7 = arith.constant 0 : index
    %c0_8 = arith.constant 0 : index
    %9 = vector.load %arg5[%c0_7, %c0_8] : memref<128x128xf32, #tpu.memory_space<vmem>>, vector<128x128xf32>
    tpu.vector_store %arg5[%c0_7, %c0_8], %8 {strides = array<i32>} : memref<128x128xf32, #tpu.memory_space<vmem>>, vector<128x128xf32>,
    return
  }
  func.func @transform_0(%arg0: i32) -> (i32, i32) {
    %c0_i32 = arith.constant 0 : i32
    %c0_i32_0 = arith.constant 0 : i32
    return %arg0, %c0_i32 : i32, i32
  }
  func.func @transform_1(%arg0: i32) -> (i32, i32) {
    %c0_i32 = arith.constant 0 : i32
    %c0_i32_0 = arith.constant 0 : i32
    %c0_i32_1 = arith.constant 0 : i32
    return %c0_i32, %c0_i32_0 : i32, i32
  }
  func.func @transform_2(%arg0: i32) -> (i32, i32) {
    %c0_i32 = arith.constant 0 : i32
    %c0_i32_0 = arith.constant 0 : i32
    %c0_i32_1 = arith.constant 0 : i32
    return %c0_i32, %c0_i32_0 : i32, i32
  }
  func.func @transform_3(%arg0: i32) -> (i32, i32) {
    %c0_i32 = arith.constant 0 : i32
    %c0_i32_0 = arith.constant 0 : i32
    return %arg0, %c0_i32 : i32, i32
  }
  func.func @transform_4(%arg0: i32) -> (i32, i32) {
    %c0_i32 = arith.constant 0 : i32
    %c0_i32_0 = arith.constant 0 : i32
    return %arg0, %c0_i32 : i32, i32
  }
}

</mosaic_0001>

<llo_original>
// kernel: tpu_custom_call.1
$region0: #{tpu_custom_call.1}
  #allocation0 [shape = 'u32[]', space=smem, size = 0x4, offset = 0x4, fixed_abs, tag = 'smem constant byte address 0x4 - core index']
  #allocation1 [shape = 'u32[144,128]{1,0:T(1,128)}', space=vmem, size = 0x12000, scoped, tag = 'internal scratch']
  %s0 = inlined_call_operand.vmem [shape: f32[128,128], index: 0, kind: input, shape index: {}]
  %s1 = inlined_call_operand.hbm [shape: f32[128,128], index: 1, kind: input, shape index: {}]
  %s2 = inlined_call_operand.vmem [shape: f32[1,128], index: 2, kind: input, shape index: {}]
  %s3 = inlined_call_operand.vmem [shape: f32[128,1], index: 3, kind: input, shape index: {}]
  %s4 = inlined_call_operand.hbm [shape: f32[128,128], index: 4, kind: output, shape index: {}]
  %s5 = sld [smem:[#allocation0]]
  $region30: #{tpu_custom_call.1} parent=0
    _
  %s7 = ssub.s32 1, %s5
  %s8 = scalar_select 0, %s7, %s5
  $region1: #{tpu_custom_call.1} parent=0
    #allocation2 [shape = 'u8[65536]{0}', space=vmem, size = 0x10000, scoped, tag = 'input window, operand 1, single buffered']
    #allocation3 [shape = 's32[1]{0}', space=sflag, size = 0x4, scoped, tag = 'scoped memory for tpu_custom_call.1']
    #allocation4 [shape = 's32[1]{0}', space=sflag, size = 0x4, scoped, tag = 'scoped memory for tpu_custom_call.1']
    #allocation5 [shape = 'u8[65536]{0}', space=vmem, size = 0x10000, scoped, tag = 'output window, operand 0, single buffered']
    %9 = vsyncpa [#allocation3], 0
    %10 = vsyncpa [#allocation4], 0
    // Predicated region
    $region2: #{tpu_custom_call.1} parent=1 // pred_check
      _
    $region3: #{tpu_custom_call.1} parent=1 // pred_check_branch
      %12 = sbr.rel (0) target = $region5
    $region4: #{tpu_custom_call.1} parent=1 // pred_region
      _
    $region5: #{tpu_custom_call.1} parent=1 // pred_fallthru
      _
    // Predicated region
    $region6: #{tpu_custom_call.1} parent=1 // pred_check
      _
    $region7: #{tpu_custom_call.1} parent=1 // pred_check_branch
      %14 = sbr.rel (0) target = $region9
    $region8: #{tpu_custom_call.1} parent=1 // pred_region
      %s16 = ssub.s32 2048, 2048
      %17 = vsyncadd [#allocation3], %s16
      %s18 = sshll.u32 [#allocation2], 4
      %s19 = int_to_ptr.vmem [resolvable:$true] %s18
      %24 = dma.hbm_to_vmem [thread:$0]  %s1, 2048, %s19, [#allocation3], 128, 128, 8
    $region9: #{tpu_custom_call.1} parent=1 // pred_fallthru
      _
    // Predicated region
    $region10: #{tpu_custom_call.1} parent=1 // pred_check
      _
    $region11: #{tpu_custom_call.1} parent=1 // pred_check_branch
      %26 = sbr.rel (0) target = $region13
    $region12: #{tpu_custom_call.1} parent=1 // pred_region
      _
    $region13: #{tpu_custom_call.1} parent=1 // pred_fallthru
      _
    // Predicated region
    $region14: #{tpu_custom_call.1} parent=1 // pred_check
      _
    $region15: #{tpu_custom_call.1} parent=1 // pred_check_branch
      %28 = sbr.rel (0) target = $region17
    $region16: #{tpu_custom_call.1} parent=1 // pred_region
      _
    $region17: #{tpu_custom_call.1} parent=1 // pred_fallthru
      _
    // Predicated region
    $region18: #{tpu_custom_call.1} parent=1 // pred_check
      _
    $region19: #{tpu_custom_call.1} parent=1 // pred_check_branch
      %30 = sbr.rel (0) target = $region21
    $region20: #{tpu_custom_call.1} parent=1 // pred_region
      %31 = dma.done [#allocation3], 2048
    $region21: #{tpu_custom_call.1} parent=1 // pred_fallthru
      _
    %v32 = vld [vmem:[%s0] sm:$0xff]
    %v33 = vld [vmem:[%s0 + $0x8] sm:$0xff]
    %v34 = vld [vmem:[%s0 + $0x10] sm:$0xff]
    %v35 = vld [vmem:[%s0 + $0x18] sm:$0xff]
    %v36 = vld [vmem:[%s0 + $0x20] sm:$0xff]
    %v37 = vld [vmem:[%s0 + $0x28] sm:$0xff]
    %v38 = vld [vmem:[%s0 + $0x30] sm:$0xff]
    %v39 = vld [vmem:[%s0 + $0x38] sm:$0xff]
    %v40 = vld [vmem:[%s0 + $0x40] sm:$0xff]
    %v41 = vld [vmem:[%s0 + $0x48] sm:$0xff]
    %v42 = vld [vmem:[%s0 + $0x50] sm:$0xff]
    %v43 = vld [vmem:[%s0 + $0x58] sm:$0xff]
    %v44 = vld [vmem:[%s0 + $0x60] sm:$0xff]
    %v45 = vld [vmem:[%s0 + $0x68] sm:$0xff]
    %v46 = vld [vmem:[%s0 + $0x70] sm:$0xff]
    %v47 = vld [vmem:[%s0 + $0x78] sm:$0xff]
    %v48 = vld [vmem:[#allocation2] sm:$0xff]
    %v49 = vld [vmem:[#allocation2 + $0x8] sm:$0xff]
    %v50 = vld [vmem:[#allocation2 + $0x10] sm:$0xff]
    %v51 = vld [vmem:[#allocation2 + $0x18] sm:$0xff]
    %v52 = vld [vmem:[#allocation2 + $0x20] sm:$0xff]
    %v53 = vld [vmem:[#allocation2 + $0x28] sm:$0xff]
    %v54 = vld [vmem:[#allocation2 + $0x30] sm:$0xff]
    %v55 = vld [vmem:[#allocation2 + $0x38] sm:$0xff]
    %v56 = vld [vmem:[#allocation2 + $0x40] sm:$0xff]
    %v57 = vld [vmem:[#allocation2 + $0x48] sm:$0xff]
    %v58 = vld [vmem:[#allocation2 + $0x50] sm:$0xff]
    %v59 = vld [vmem:[#allocation2 + $0x58] sm:$0xff]
    %v60 = vld [vmem:[#allocation2 + $0x60] sm:$0xff]
    %v61 = vld [vmem:[#allocation2 + $0x68] sm:$0xff]
    %v62 = vld [vmem:[#allocation2 + $0x70] sm:$0xff]
    %v63 = vld [vmem:[#allocation2 + $0x78] sm:$0xff]
    %v64 = vld [vmem:[%s3] sm:$0xff]
    %v65 = vld [vmem:[%s3 + $0x8] sm:$0xff]
    %v66 = vld [vmem:[%s3 + $0x10] sm:$0xff]
    %v67 = vld [vmem:[%s3 + $0x18] sm:$0xff]
    %v68 = vld [vmem:[%s3 + $0x20] sm:$0xff]
    %v69 = vld [vmem:[%s3 + $0x28] sm:$0xff]
    %v70 = vld [vmem:[%s3 + $0x30] sm:$0xff]
    %v71 = vld [vmem:[%s3 + $0x38] sm:$0xff]
    %v72 = vld [vmem:[%s3 + $0x40] sm:$0xff]
    %v73 = vld [vmem:[%s3 + $0x48] sm:$0xff]
    %v74 = vld [vmem:[%s3 + $0x50] sm:$0xff]
    %v75 = vld [vmem:[%s3 + $0x58] sm:$0xff]
    %v76 = vld [vmem:[%s3 + $0x60] sm:$0xff]
    %v77 = vld [vmem:[%s3 + $0x68] sm:$0xff]
    %v78 = vld [vmem:[%s3 + $0x70] sm:$0xff]
    %v79 = vld [vmem:[%s3 + $0x78] sm:$0xff]
    %v80 = vld [vmem:[%s2] sm:$0x1]
    %v82 = vlaneseq
    %v83 = vshrl.u32 %v82, 7
    %v84 = vsub.s32 0, %v83
    %v85 = vrot.slane %v80, %v84
    %87 = vmatprep.subr.mxu0 0.0
    %88 = vmatpush1.msra.mxu0 %v48
    %89 = vmatprep.subr.mxu0 0.0
    %90 = vmatpush1.msra.mxu0 %v49
    %91 = vmatprep.subr.mxu0 0.0
    %92 = vmatpush1.msra.mxu0 %v50
    %93 = vmatprep.subr.mxu0 0.0
    %94 = vmatpush1.msra.mxu0 %v51
    %95 = vmatprep.subr.mxu0 0.0
    %96 = vmatpush1.msra.mxu0 %v52
    %97 = vmatprep.subr.mxu0 0.0
    %98 = vmatpush1.msra.mxu0 %v53
    %99 = vmatprep.subr.mxu0 0.0
    %100 = vmatpush1.msra.mxu0 %v54
    %101 = vmatprep.subr.mxu0 0.0
    %102 = vmatpush1.msra.mxu0 %v55
    %103 = vmatprep.subr.mxu0 0.0
    %104 = vmatpush1.msra.mxu0 %v56
    %105 = vmatprep.subr.mxu0 0.0
    %106 = vmatpush1.msra.mxu0 %v57
    %107 = vmatprep.subr.mxu0 0.0
    %108 = vmatpush1.msra.mxu0 %v58
    %109 = vmatprep.subr.mxu0 0.0
    %110 = vmatpush1.msra.mxu0 %v59
    %111 = vmatprep.subr.mxu0 0.0
    %112 = vmatpush1.msra.mxu0 %v60
    %113 = vmatprep.subr.mxu0 0.0
    %114 = vmatpush1.msra.mxu0 %v61
    %115 = vmatprep.subr.mxu0 0.0
    %116 = vmatpush1.msra.mxu0 %v62
    %117 = vmatprep.subr.mxu0 0.0
    %118 = vmatpush1.msra.mxu0 %v63
    %119 = vmatprep.subr.mxu0 0.0
    %120 = vmatpush1.msra.mxu0 0.0
    %121 = vmatprep.subr.mxu0 0.0
    %122 = vmatpush1.msra.mxu0 0.0
    %123 = vmatprep.subr.mxu0 0.0
    %124 = vmatpush1.msra.mxu0 0.0
    %125 = vmatprep.subr.mxu0 0.0
    %126 = vmatpush1.msra.mxu0 0.0
    %127 = vmatprep.subr.mxu0 0.0
    %128 = vmatpush1.msra.mxu0 0.0
    %129 = vmatprep.subr.mxu0 0.0
    %130 = vmatpush1.msra.mxu0 0.0
    %131 = vmatprep.subr.mxu0 0.0
    %132 = vmatpush1.msra.mxu0 0.0
    %133 = vmatprep.subr.mxu0 0.0
    %134 = vmatpush1.msra.mxu0 0.0
    %135 = vmatprep.subr.mxu0 0.0
    %136 = vmatpush1.msra.mxu0 0.0
    %137 = vmatprep.subr.mxu0 0.0
    %138 = vmatpush1.msra.mxu0 0.0
    %139 = vmatprep.subr.mxu0 0.0
    %140 = vmatpush1.msra.mxu0 0.0
    %141 = vmatprep.subr.mxu0 0.0
    %142 = vmatpush1.msra.mxu0 0.0
    %143 = vmatprep.subr.mxu0 0.0
    %144 = vmatpush1.msra.mxu0 0.0
    %145 = vmatprep.subr.mxu0 0.0
    %146 = vmatpush1.msra.mxu0 0.0
    %147 = vmatprep.subr.mxu0 0.0
    %148 = vmatpush1.msra.mxu0 0.0
    %149 = vmatprep.subr.mxu0 0.0
    %150 = vmatpush1.msra.mxu0 0.0
    %151 = vmatprep.mubr.f32.mxu0 0.0
    %152 = vmatmul.mubr.f32.gmra.mrb[0].mxu0 %v32
    %v153 = vpop.f32.mrb[0].mxu0
    %v154 = vadd.f32 %v85, %v153
    %v155 = vpop.f32.mrb[0].mxu0
    %156 = vmatprep.mubr.f32.mxu0 0.0
    %157 = vmatmul.mubr.f32.gmra.mrb[0].mxu0 %v33
    %v158 = vpop.f32.mrb[0].mxu0
    %v159 = vadd.f32 %v85, %v158
    %v160 = vpop.f32.mrb[0].mxu0
    %161 = vmatprep.mubr.f32.mxu0 0.0
    %162 = vmatmul.mubr.f32.gmra.mrb[0].mxu0 %v34
    %v163 = vpop.f32.mrb[0].mxu0
    %v164 = vadd.f32 %v85, %v163
    %v165 = vpop.f32.mrb[0].mxu0
    %166 = vmatprep.mubr.f32.mxu0 0.0
    %167 = vmatmul.mubr.f32.gmra.mrb[0].mxu0 %v35
    %v168 = vpop.f32.mrb[0].mxu0
    %v169 = vadd.f32 %v85, %v168
    %v170 = vpop.f32.mrb[0].mxu0
    %171 = vmatprep.mubr.f32.mxu0 0.0
    %172 = vmatmul.mubr.f32.gmra.mrb[0].mxu0 %v36
    %v173 = vpop.f32.mrb[0].mxu0
    %v174 = vadd.f32 %v85, %v173
    %v175 = vpop.f32.mrb[0].mxu0
    %176 = vmatprep.mubr.f32.mxu0 0.0
    %177 = vmatmul.mubr.f32.gmra.mrb[0].mxu0 %v37
    %v178 = vpop.f32.mrb[0].mxu0
    %v179 = vadd.f32 %v85, %v178
    %v180 = vpop.f32.mrb[0].mxu0
    %181 = vmatprep.mubr.f32.mxu0 0.0
    %182 = vmatmul.mubr.f32.gmra.mrb[0].mxu0 %v38
    %v183 = vpop.f32.mrb[0].mxu0
    %v184 = vadd.f32 %v85, %v183
    %v185 = vpop.f32.mrb[0].mxu0
    %186 = vmatprep.mubr.f32.mxu0 0.0
    %187 = vmatmul.mubr.f32.gmra.mrb[0].mxu0 %v39
    %v188 = vpop.f32.mrb[0].mxu0
    %v189 = vadd.f32 %v85, %v188
    %v190 = vpop.f32.mrb[0].mxu0
    %191 = vmatprep.mubr.f32.mxu0 0.0
    %192 = vmatmul.mubr.f32.gmra.mrb[0].mxu0 %v40
    %v193 = vpop.f32.mrb[0].mxu0
    %v194 = vadd.f32 %v85, %v193
    %v195 = vpop.f32.mrb[0].mxu0
    %196 = vmatprep.mubr.f32.mxu0 0.0
    %197 = vmatmul.mubr.f32.gmra.mrb[0].mxu0 %v41
    %v198 = vpop.f32.mrb[0].mxu0
    %v199 = vadd.f32 %v85, %v198
    %v200 = vpop.f32.mrb[0].mxu0
    %201 = vmatprep.mubr.f32.mxu0 0.0
    %202 = vmatmul.mubr.f32.gmra.mrb[0].mxu0 %v42
    %v203 = vpop.f32.mrb[0].mxu0
    %v204 = vadd.f32 %v85, %v203
    %v205 = vpop.f32.mrb[0].mxu0
    %206 = vmatprep.mubr.f32.mxu0 0.0
    %207 = vmatmul.mubr.f32.gmra.mrb[0].mxu0 %v43
    %v208 = vpop.f32.mrb[0].mxu0
    %v209 = vadd.f32 %v85, %v208
    %v210 = vpop.f32.mrb[0].mxu0
    %211 = vmatprep.mubr.f32.mxu0 0.0
    %212 = vmatmul.mubr.f32.gmra.mrb[0].mxu0 %v44
    %v213 = vpop.f32.mrb[0].mxu0
    %v214 = vadd.f32 %v85, %v213
    %v215 = vpop.f32.mrb[0].mxu0
    %216 = vmatprep.mubr.f32.mxu0 0.0
    %217 = vmatmul.mubr.f32.gmra.mrb[0].mxu0 %v45
    %v218 = vpop.f32.mrb[0].mxu0
    %v219 = vadd.f32 %v85, %v218
    %v220 = vpop.f32.mrb[0].mxu0
    %221 = vmatprep.mubr.f32.mxu0 0.0
    %222 = vmatmul.mubr.f32.gmra.mrb[0].mxu0 %v46
    %v223 = vpop.f32.mrb[0].mxu0
    %v224 = vadd.f32 %v85, %v223
    %v225 = vpop.f32.mrb[0].mxu0
    %226 = vmatprep.mubr.f32.mxu0 0.0
    %227 = vmatmul.mubr.f32.gmra.mrb[0].mxu0 %v47
    %v228 = vpop.f32.mrb[0].mxu0
    %v229 = vadd.f32 %v85, %v228
    %v230 = vpop.f32.mrb[0].mxu0
    %231 = vdwg.mxu0
    %233 = vset.pattern.permute.xlu0 0
    %234 = vperm.xlu0 %233, %v64
    %v235 = vpop.permute.xlu0 %234
    %238 = vset.pattern.permute.xlu0 0
    %239 = vperm.xlu0 %238, %v65
    %v240 = vpop.permute.xlu0 %239
    %243 = vset.pattern.permute.xlu0 0
    %244 = vperm.xlu0 %243, %v66
    %v245 = vpop.permute.xlu0 %244
    %248 = vset.pattern.permute.xlu0 0
    %249 = vperm.xlu0 %248, %v67
    %v250 = vpop.permute.xlu0 %249
    %253 = vset.pattern.permute.xlu0 0
    %254 = vperm.xlu0 %253, %v68
    %v255 = vpop.permute.xlu0 %254
    %258 = vset.pattern.permute.xlu0 0
    %259 = vperm.xlu0 %258, %v69
    %v260 = vpop.permute.xlu0 %259
    %263 = vset.pattern.permute.xlu0 0
    %264 = vperm.xlu0 %263, %v70
    %v265 = vpop.permute.xlu0 %264
    %268 = vset.pattern.permute.xlu0 0
    %269 = vperm.xlu0 %268, %v71
    %v270 = vpop.permute.xlu0 %269
    %273 = vset.pattern.permute.xlu0 0
    %274 = vperm.xlu0 %273, %v72
    %v275 = vpop.permute.xlu0 %274
    %278 = vset.pattern.permute.xlu0 0
    %279 = vperm.xlu0 %278, %v73
    %v280 = vpop.permute.xlu0 %279
    %283 = vset.pattern.permute.xlu0 0
    %284 = vperm.xlu0 %283, %v74
    %v285 = vpop.permute.xlu0 %284
    %288 = vset.pattern.permute.xlu0 0
    %289 = vperm.xlu0 %288, %v75
    %v290 = vpop.permute.xlu0 %289
    %293 = vset.pattern.permute.xlu0 0
    %294 = vperm.xlu0 %293, %v76
    %v295 = vpop.permute.xlu0 %294
    %298 = vset.pattern.permute.xlu0 0
    %299 = vperm.xlu0 %298, %v77
    %v300 = vpop.permute.xlu0 %299
    %303 = vset.pattern.permute.xlu0 0
    %304 = vperm.xlu0 %303, %v78
    %v305 = vpop.permute.xlu0 %304
    %308 = vset.pattern.permute.xlu0 0
    %309 = vperm.xlu0 %308, %v79
    %v310 = vpop.permute.xlu0 %309
    %v312 = vmul.f32 %v235, %v154
    %v313 = vmul.f32 %v240, %v159
    %v314 = vmul.f32 %v245, %v164
    %v315 = vmul.f32 %v250, %v169
    %v316 = vmul.f32 %v255, %v174
    %v317 = vmul.f32 %v260, %v179
    %v318 = vmul.f32 %v265, %v184
    %v319 = vmul.f32 %v270, %v189
    %v320 = vmul.f32 %v275, %v194
    %v321 = vmul.f32 %v280, %v199
    %v322 = vmul.f32 %v285, %v204
    %v323 = vmul.f32 %v290, %v209
    %v324 = vmul.f32 %v295, %v214
    %v325 = vmul.f32 %v300, %v219
    %v326 = vmul.f32 %v305, %v224
    %v327 = vmul.f32 %v310, %v229
    %328 = vst [vmem:[#allocation5] sm:$0xff] %v312
    %329 = vst [vmem:[#allocation5 + $0x8] sm:$0xff] %v313
    %330 = vst [vmem:[#allocation5 + $0x10] sm:$0xff] %v314
    %331 = vst [vmem:[#allocation5 + $0x18] sm:$0xff] %v315
    %332 = vst [vmem:[#allocation5 + $0x20] sm:$0xff] %v316
    %333 = vst [vmem:[#allocation5 + $0x28] sm:$0xff] %v317
    %334 = vst [vmem:[#allocation5 + $0x30] sm:$0xff] %v318
    %335 = vst [vmem:[#allocation5 + $0x38] sm:$0xff] %v319
    %336 = vst [vmem:[#allocation5 + $0x40] sm:$0xff] %v320
    %337 = vst [vmem:[#allocation5 + $0x48] sm:$0xff] %v321
    %338 = vst [vmem:[#allocation5 + $0x50] sm:$0xff] %v322
    %339 = vst [vmem:[#allocation5 + $0x58] sm:$0xff] %v323
    %340 = vst [vmem:[#allocation5 + $0x60] sm:$0xff] %v324
    %341 = vst [vmem:[#allocation5 + $0x68] sm:$0xff] %v325
    %342 = vst [vmem:[#allocation5 + $0x70] sm:$0xff] %v326
    %343 = vst [vmem:[#allocation5 + $0x78] sm:$0xff] %v327
    // Predicated region
    $region22: #{tpu_custom_call.1} parent=1 // pred_check
      _
    $region23: #{tpu_custom_call.1} parent=1 // pred_check_branch
      %345 = sbr.rel (0) target = $region25
    $region24: #{tpu_custom_call.1} parent=1 // pred_region
      %s347 = ssub.s32 2048, 2048
      %348 = vsyncadd [#allocation4], %s347
      %s349 = sshll.u32 [#allocation5], 4
      %s350 = int_to_ptr.vmem [resolvable:$true] %s349
      %355 = dma.vmem_to_hbm [thread:$0]  %s350, 2048, %s4, [#allocation4], 128, 128, 8
    $region25: #{tpu_custom_call.1} parent=1 // pred_fallthru
      _
    // Predicated region
    $region26: #{tpu_custom_call.1} parent=1 // pred_check
      _
    $region27: #{tpu_custom_call.1} parent=1 // pred_check_branch
      %357 = sbr.rel (0) target = $region29
    $region28: #{tpu_custom_call.1} parent=1 // pred_region
      %358 = dma.done [#allocation4], 2048
    $region29: #{tpu_custom_call.1} parent=1 // pred_fallthru
      _
    %359 = vsyncpa [#allocation3], 1
    %360 = vsyncpa [#allocation4], 1

</llo_original>
